<compile_context>
chip_gen: v6e
topology: v6e:2x2x1
jax: 0.10.0
libtpu: 0.0.40
codegen_flags: <defaults>
</compile_context>

<pallas_src>
import jax
import jax.numpy as jnp
import numpy as np
from jax.experimental import pallas as pl
from jax.experimental.pallas import tpu as pltpu


# ----------------------------------------------------------------------------
# Kernels
# ----------------------------------------------------------------------------

def _pos_generate_kernel(inv_freq_ref, out_ref):
    """Generate one (TS, D) tile of the sinusoidal table (write-only HBM)."""
    ts, d = out_ref.shape
    base = pl.program_id(0) * ts
    row = jax.lax.broadcasted_iota(jnp.int32, (ts, d), 0) + base      # position
    lane = jax.lax.broadcasted_iota(jnp.int32, (ts, d), 1)            # column
    ang = row.astype(jnp.float32) * inv_freq_ref[...]                 # (1,D) bcast
    enc = jnp.where((lane & 1) == 0, jnp.sin(ang), jnp.cos(ang))
    out_ref[...] = enc.astype(out_ref.dtype)


def _pos_copy_kernel(enc_ref, out_ref):
    """Fallback: plain tiled copy of a precomputed table slice."""
    out_ref[...] = enc_ref[...]


# ----------------------------------------------------------------------------
# Host-side helpers
# ----------------------------------------------------------------------------

def make_inv_freq(d_model):
    """Per-column inverse frequency: inv_freq[d] = 10000 ** (-(2*(d//2)) / d_model)."""
    two_i = 2.0 * (np.arange(d_model) // 2).astype(np.float64)
    inv = 1.0 / (10000.0 ** (two_i / float(d_model)))
    return jnp.asarray(inv, dtype=jnp.float32).reshape(1, d_model)


def make_position_encoding(max_len, d_model, dtype=jnp.float32):
    """Pure-JAX table, matching PositionEmbedding.__init__ (used as reference /
    for the fallback copy path)."""
    pos = jnp.arange(max_len, dtype=jnp.float32)[:, None]
    _2i = jnp.arange(0, d_model, 2, dtype=jnp.float32)
    angle = pos / (10000.0 ** (_2i / d_model))
    enc = jnp.zeros((max_len, d_model), jnp.float32)
    enc = enc.at[:, 0::2].set(jnp.sin(angle))
    enc = enc.at[:, 1::2].set(jnp.cos(angle)[:, : d_model // 2])
    return enc.astype(dtype)


def _choose_seq_tile(seq_len, d, itemsize, block_bytes):
    """Rows per block sized by a byte budget; multiple of 8, at least 8."""
    rows = max((block_bytes // max(d * itemsize, 1)) // 8 * 8, 8)
    if rows >= seq_len:
        # Whole sequence fits in one block.  For large, 16-aligned S, split into
        # 2 parallel grid steps so v7x can shard the axis across its 2 TCs.
        if seq_len % 16 == 0 and seq_len * d * itemsize >= (1 << 20):
            return seq_len // 2
        return seq_len  # full-extent block: exempt from the (8,128) rule
    return rows


_VMEM_LIMIT = 32 * 1024 * 1024  # safe on v5e/v6e/v7x; pipeline uses only a few MiB


# ----------------------------------------------------------------------------
# Forward implementations
# ----------------------------------------------------------------------------

def position_encoding_generate(seq_len, inv_freq, *, dtype=jnp.float32,
                               block_bytes=2 << 20):
    """encoding[:seq_len, :] generated in-kernel (write-only HBM traffic)."""
    _, d_model = inv_freq.shape
    itemsize = jnp.dtype(dtype).itemsize
    ts = _choose_seq_tile(seq_len, d_model, itemsize, block_bytes)
    grid = (pl.cdiv(seq_len, ts),)

    return pl.pallas_call(
        _pos_generate_kernel,
        out_shape=jax.ShapeDtypeStruct((seq_len, d_model), dtype),
        grid_spec=pltpu.PrefetchScalarGridSpec(
            num_scalar_prefetch=0,
            grid=grid,
            in_specs=[pl.BlockSpec((1, d_model), lambda i: (0, 0))],  # resident
            out_specs=pl.BlockSpec((ts, d_model), lambda i: (i, 0)),
        ),
        compiler_params=pltpu.CompilerParams(
            dimension_semantics=("parallel",),
            vmem_limit_bytes=_VMEM_LIMIT,
        ),
        cost_estimate=pl.CostEstimate(
            flops=2 * seq_len * d_model,
            transcendentals=seq_len * d_model,
            bytes_accessed=seq_len * d_model * itemsize + d_model * 4,
        ),
    )(inv_freq)


def position_encoding_copy(seq_len, encoding, *, block_bytes=2 << 20):
    """Fallback path: tiled Pallas copy of the precomputed table's row slice."""
    enc = encoding[:seq_len]  # contiguous leading-row slice (plain XLA)
    s, d = enc.shape
    itemsize = jnp.dtype(enc.dtype).itemsize
    ts = _choose_seq_tile(s, d, itemsize, block_bytes)
    grid = (pl.cdiv(s, ts),)

    return pl.pallas_call(
        _pos_copy_kernel,
        out_shape=jax.ShapeDtypeStruct((s, d), enc.dtype),
        grid_spec=pltpu.PrefetchScalarGridSpec(
            num_scalar_prefetch=0,
            grid=grid,
            in_specs=[pl.BlockSpec((ts, d), lambda i: (i, 0))],
            out_specs=pl.BlockSpec((ts, d), lambda i: (i, 0)),
        ),
        compiler_params=pltpu.CompilerParams(
            dimension_semantics=("parallel",),
            vmem_limit_bytes=_VMEM_LIMIT,
        ),
        cost_estimate=pl.CostEstimate(
            flops=0, transcendentals=0, bytes_accessed=2 * s * d * itemsize),
    )(enc)


class PositionEmbedding:
    """JAX/Pallas port of the PyTorch module (inference forward)."""

    def __init__(self, d_model, max_len, dtype=jnp.float32):
        self.d_model = d_model
        self.max_len = max_len
        self.dtype = dtype
        self.inv_freq = make_inv_freq(d_model)
        self._encoding = None       # built lazily, only if the generate path fails
        self._generate_ok = True

    def __call__(self, x):
        _, seq_len = x.shape        # only the shape is used, as in PyTorch
        if seq_len > self.max_len:
            raise ValueError(f"seq_len={seq_len} exceeds max_len={self.max_len}")

        if self._generate_ok:
            try:
                return position_encoding_generate(seq_len, self.inv_freq,
                                                  dtype=self.dtype)
            except Exception:
                # Safety net only: if sin/cos cannot be lowered on this backend,
                # fall back to a tiled copy of the precomputed table.
                self._generate_ok = False

        if self._encoding is None:
            self._encoding = make_position_encoding(self.max_len, self.d_model,
                                                    self.dtype)
        return position_encoding_copy(seq_len, self._encoding)


if __name__ == "__main__":
    # Small, deterministic setup consistent with the module's forward.
    B, S = 2, 8
    d_model = 128        # lane-aligned
    max_len = 16

    key = jax.random.PRNGKey(0)
    x = jax.random.randint(key, (B, S), 0, 32, dtype=jnp.int32)

    module = PositionEmbedding(d_model, max_len)
    out = jax.block_until_ready(module(x))

    # Pure-JAX reference: forward is exactly encoding[:seq_len, :].
    ref = make_position_encoding(max_len, d_model)[:S, :]
    assert out.shape == (S, d_model)
    np.testing.assert_allclose(np.asarray(out), np.asarray(ref),
                               rtol=1e-4, atol=1e-4)

    print("KERNEL_OK")
</pallas_src>

<mosaic_0001>
module attributes {stable_mosaic.version = 11 : i64} {
  func.func @_pos_generate_kernel(%arg0: i32, %arg1: memref<1x128xf32, #tpu.memory_space<vmem>>, %arg2: memref<8x128xf32, #tpu.memory_space<vmem>>) attributes {dimension_semantics = [#tpu.dimension_semantics<parallel>], iteration_bounds = array<i64: 1>, scalar_prefetch = 0 : i64, scratch_operands = 0 : i64, tpu.core_type = #tpu.core_type<tc>, window_params = [{pipeline_mode = #tpu.pipeline_mode<synchronous>, transform_indices = @transform_0, window_bounds = array<i64: 1, 128>}, {transform_indices = @transform_1, window_bounds = array<i64: 8, 128>}]} {
    %c8_i32 = arith.constant 8 : i32
    %0 = arith.muli %arg0, %c8_i32 : i32
    %1 = tpu.iota {dimensions = array<i32: 0>} : vector<8x128xi32>
    %2 = vector.broadcast %0 : i32 to vector<8x128xi32>
    %3 = arith.addi %1, %2 : vector<8x128xi32>
    %4 = tpu.iota {dimensions = array<i32: 1>} : vector<8x128xi32>
    %5 = arith.sitofp %3 : vector<8x128xi32> to vector<8x128xf32>
    %c0 = arith.constant 0 : index
    %c0_0 = arith.constant 0 : index
    %6 = vector.load %arg1[%c0, %c0_0] : memref<1x128xf32, #tpu.memory_space<vmem>>, vector<1x128xf32>
    %7 = vector.broadcast %6 : vector<1x128xf32> to vector<8x128xf32>
    %8 = arith.mulf %5, %7 : vector<8x128xf32>
    %c1_i32 = arith.constant 1 : i32
    %9 = vector.broadcast %c1_i32 : i32 to vector<8x128xi32>
    %10 = arith.andi %4, %9 : vector<8x128xi32>
    %c0_i32 = arith.constant 0 : i32
    %11 = vector.broadcast %c0_i32 : i32 to vector<8x128xi32>
    %12 = arith.cmpi eq, %10, %11 : vector<8x128xi32>
    %13 = math.sin %8 : vector<8x128xf32>
    %14 = math.cos %8 : vector<8x128xf32>
    %15 = arith.select %12, %13, %14 : vector<8x128xi1>, vector<8x128xf32>
    %c0_1 = arith.constant 0 : index
    %c0_2 = arith.constant 0 : index
    %16 = vector.load %arg2[%c0_1, %c0_2] : memref<8x128xf32, #tpu.memory_space<vmem>>, vector<8x128xf32>
    tpu.vector_store %arg2[%c0_1, %c0_2], %15 {strides = array<i32>} : memref<8x128xf32, #tpu.memory_space<vmem>>, vector<8x128xf32>,
    return
  }
  func.func @transform_0(%arg0: i32) -> (i32, i32) {
    %c0_i32 = arith.constant 0 : i32
    %c0_i32_0 = arith.constant 0 : i32
    %c0_i32_1 = arith.constant 0 : i32
    return %c0_i32, %c0_i32_0 : i32, i32
  }
  func.func @transform_1(%arg0: i32) -> (i32, i32) {
    %c0_i32 = arith.constant 0 : i32
    %c0_i32_0 = arith.constant 0 : i32
    return %arg0, %c0_i32 : i32, i32
  }
}

module attributes {stable_mosaic.version = 11 : i64} {
  func.func @_pos_copy_kernel(%arg0: i32, %arg1: memref<8x128xf32, #tpu.memory_space<vmem>>, %arg2: memref<8x128xf32, #tpu.memory_space<vmem>>) attributes {dimension_semantics = [#tpu.dimension_semantics<parallel>], iteration_bounds = array<i64: 1>, scalar_prefetch = 0 : i64, scratch_operands = 0 : i64, tpu.core_type = #tpu.core_type<tc>, window_params = [{transform_indices = @transform_0, window_bounds = array<i64: 8, 128>}, {transform_indices = @transform_1, window_bounds = array<i64: 8, 128>}]} {
    %c0 = arith.constant 0 : index
    %c0_0 = arith.constant 0 : index
    %0 = vector.load %arg1[%c0, %c0_0] : memref<8x128xf32, #tpu.memory_space<vmem>>, vector<8x128xf32>
    %c0_1 = arith.constant 0 : index
    %c0_2 = arith.constant 0 : index
    %1 = vector.load %arg2[%c0_1, %c0_2] : memref<8x128xf32, #tpu.memory_space<vmem>>, vector<8x128xf32>
    tpu.vector_store %arg2[%c0_1, %c0_2], %0 {strides = array<i32>} : memref<8x128xf32, #tpu.memory_space<vmem>>, vector<8x128xf32>,
    return
  }
  func.func @transform_0(%arg0: i32) -> (i32, i32) {
    %c0_i32 = arith.constant 0 : i32
    %c0_i32_0 = arith.constant 0 : i32
    return %arg0, %c0_i32 : i32, i32
  }
  func.func @transform_1(%arg0: i32) -> (i32, i32) {
    %c0_i32 = arith.constant 0 : i32
    %c0_i32_0 = arith.constant 0 : i32
    return %arg0, %c0_i32 : i32, i32
  }
}

</mosaic_0001>

<llo_original>
// kernel: tpu_custom_call.1
$region0: #{tpu_custom_call.1}
  #allocation0 [shape = 'u32[]', space=smem, size = 0x4, offset = 0x4, fixed_abs, tag = 'smem constant byte address 0x4 - core index']
  #allocation1 [shape = 'u32[144,128]{1,0:T(1,128)}', space=vmem, size = 0x12000, scoped, tag = 'internal scratch']
  %s0 = inlined_call_operand.hbm [shape: f32[1,128], index: 0, kind: input, shape index: {}]
  %s1 = inlined_call_operand.hbm [shape: f32[8,128], index: 1, kind: output, shape index: {}]
  %s2 = sld [smem:[#allocation0]]
  $region18: #{tpu_custom_call.1} parent=0
    _
  %s4 = ssub.s32 1, %s2
  %s5 = scalar_select 0, %s4, %s2
  $region1: #{tpu_custom_call.1} parent=0
    #allocation2 [shape = 'u8[512]{0}', space=vmem, size = 0x400, scoped, tag = 'input window, operand 0, single buffered']
    #allocation3 [shape = 's32[1]{0}', space=sflag, size = 0x4, scoped, tag = 'scoped memory for tpu_custom_call.1']
    #allocation4 [shape = 's32[1]{0}', space=sflag, size = 0x4, scoped, tag = 'scoped memory for tpu_custom_call.1']
    #allocation5 [shape = 'u8[4096]{0}', space=vmem, size = 0x1000, scoped, tag = 'output window, operand 0, single buffered']
    %6 = vsyncpa [#allocation3], 0
    %7 = vsyncpa [#allocation4], 0
    // Predicated region
    $region2: #{tpu_custom_call.1} parent=1 // pred_check
      _
    $region3: #{tpu_custom_call.1} parent=1 // pred_check_branch
      %9 = sbr.rel (0) target = $region5
    $region4: #{tpu_custom_call.1} parent=1 // pred_region
      %s11 = ssub.s32 16, 16
      %12 = vsyncadd [#allocation3], %s11
      %s14 = sshll.u32 [#allocation2], 4
      %s15 = int_to_ptr.vmem [resolvable:$true] %s14
      %17 = dma.hbm_to_vmem [thread:$0]  %s0, 16, %s15, [#allocation3]
    $region5: #{tpu_custom_call.1} parent=1 // pred_fallthru
      _
    // Predicated region
    $region6: #{tpu_custom_call.1} parent=1 // pred_check
      _
    $region7: #{tpu_custom_call.1} parent=1 // pred_check_branch
      %19 = sbr.rel (0) target = $region9
    $region8: #{tpu_custom_call.1} parent=1 // pred_region
      %20 = dma.done [#allocation3], 16
    $region9: #{tpu_custom_call.1} parent=1 // pred_fallthru
      _
    %s21 = smul.u32 0, 8
    %v22 = vlaneseq
    %v23 = vshrl.u32 %v22, 7
    %v24 = vstv %s21
    %v25 = vadd.s32 %v23, %v24
    %v26 = vlaneseq
    %v27 = vand.u32 %v26, 127
    %v28 = vcvt.s32.f32 %v25
    %v29 = vld [vmem:[#allocation2] sm:$0x1]
    %v31 = vlaneseq
    %v32 = vshrl.u32 %v31, 7
    %v33 = vsub.s32 0, %v32
    %v34 = vrot.slane %v29, %v33
    %v36 = vmul.f32 %v28, %v34
    %v37 = vand.u32 %v27, 1
    %vm38 = vcmp.eq.s32.totalorder %v37, 0
    %v39 = vand.u32 2147483647, %v36
    %vm40 = vcmp.le.f32.partialorder %v39, 0.7853982
    %vm41 = vcmp.lt.s32.totalorder %v36, 0
    %v42 = vand.u32 %v36, 2139095040
    %v43 = vshrl.u32 %v42, 23
    %v44 = vsub.s32 %v43, 127
    %v45 = vand.u32 2147483647, %v36
    %v46 = vand.u32 %v45, 8388607
    %v47 = vor.u32 %v46, 8388608
    %v48 = vsub.s32 0, %v47
    %v49 = vadd.s32 %v44, 1
    %vm50 = vcmp.gt.s32.totalorder %v49, 0
    %v51 = vsel %vm50, %v49, 0
    %v52 = vshrl.u32 %v51, 5
    %v53 = vand.u32 %v51, 31
    %v54 = vsub.s32 32, %v53
    %v55 = vshrl.u32 683565275, %v54
    %v56 = vshll.u32 683565275, %v53
    %v57 = vshrl.u32 2475754826, %v54
    %v58 = vor.u32 %v56, %v57
    %v59 = vshll.u32 2475754826, %v53
    %v60 = vshrl.u32 2131351028, %v54
    %v61 = vor.u32 %v59, %v60
    %v62 = vshll.u32 2131351028, %v53
    %v63 = vshrl.u32 2102212464, %v54
    %v64 = vor.u32 %v62, %v63
    %v65 = vshll.u32 2102212464, %v53
    %v66 = vshrl.u32 920167782, %v54
    %v67 = vor.u32 %v65, %v66
    %v68 = vshll.u32 920167782, %v53
    %v69 = vshrl.u32 1326507024, %v54
    %v70 = vor.u32 %v68, %v69
    %vm71 = vcmp.lt.s32.totalorder %v52, 1
    %vm72 = vcmp.lt.s32.totalorder %v52, 2
    %vm73 = vcmp.lt.s32.totalorder %v52, 3
    %vm74 = vcmp.lt.s32.totalorder %v52, 4
    %v75 = vsel %vm71, %v55, %v58
    %v76 = vsel %vm74, %v64, 2102212464
    %v77 = vsel %vm73, %v61, %v76
    %v78 = vsel %vm72, %v75, %v77
    %v79 = vsel %vm71, %v58, %v61
    %v80 = vsel %vm74, %v67, 920167782
    %v81 = vsel %vm73, %v64, %v80
    %v82 = vsel %vm72, %v79, %v81
    %v83 = vsel %vm71, %v61, %v64
    %v84 = vsel %vm74, %v70, 1326507024
    %v85 = vsel %vm73, %v67, %v84
    %v86 = vsel %vm72, %v83, %v85
    %v87 = vshll.u32 %v47, 8
    %v88 = vmul.u32.u64.compose %v87, %v86
    %v89 = vextract.low.u32 %v88
    %v90 = vextract.high.u32 %v88
    %v91 = vmul.u32.u64.compose %v87, %v82
    %v92 = vextract.low.u32 %v91
    %v93 = vextract.high.u32 %v91
    %v94 = vmul.u32 %v87, %v78
    %v95 = vadd.s32 %v90, %v92
    %vm96 = vc.u32 %v90, %v92
    %v97 = vadd.s32 %v93, 1
    %v98 = vsel %vm96, %v97, %v93
    %v99 = vadd.s32 %v94, %v98
    %v100 = vadd.s32 %v99, 536870912
    %v101 = vshrl.u32 %v100, 30
    %v102 = vshll.u32 %v101, 30
    %v103 = vsub.s32 %v99, %v102
    %vm104 = vcmp.lt.s32.totalorder %v103, 0
    %v105 = vsub.s32 0, %v103
    %v106 = vsel %vm104, %v105, %v103
    %v107 = vclz %v106
    %v108 = vsub.s32 %v107, 2
    %vm109 = vcmp.gt.s32.totalorder 0, %v108
    %v110 = vsel %vm109, 0, %v108
    %v111 = vsub.s32 32, %v110
    %v112 = vshll.u32 %v103, %v110
    %v113 = vshrl.u32 %v95, %v111
    %v114 = vor.u32 %v112, %v113
    %v115 = vsub.s32 4294967266, %v110
    %v116 = vadd.s32 %v115, 127
    %v117 = vshll.u32 %v116, 23
    %v118 = vor.u32 4788187, %v117
    %v119 = vand.u32 2147483647, %v118
    %v121 = vcvt.s32.f32 %v114
    %v122 = vmul.f32 %v121, %v119
    %v123 = vxor.u32 %v122, 2147483648
    %v124 = vsel %vm41, %v123, %v122
    %v125 = vsub.s32 4, %v101
    %v126 = vsel %vm41, %v125, %v101
    %v127 = vsel %vm40, %v36, %v124
    %v128 = vsel %vm40, 0, %v126
    %v129 = vcosq.f32.pop %v127
    %v130 = vsinq.f32.pop %v127
    %vm131 = vweird.f32 %v36
    %v132 = vadd.s32 %v128, 3
    %v133 = vand.u32 %v132, 3
    %vm134 = vcmp.lt.s32.totalorder %v133, 2
    %vm135 = vcmp.eq.s32.totalorder %v133, 0
    %v136 = vxor.u32 %v130, 2147483648
    %v137 = vsel %vm135, %v129, %v136
    %vm138 = vcmp.eq.s32.totalorder %v133, 2
    %v139 = vxor.u32 %v129, 2147483648
    %v140 = vsel %vm138, %v139, %v130
    %v141 = vsel %vm134, %v137, %v140
    %v142 = vsel %vm131, nan, %v141
    %v143 = vand.u32 2147483647, %v36
    %vm144 = vcmp.le.f32.partialorder %v143, 0.7853982
    %vm145 = vcmp.lt.s32.totalorder %v36, 0
    %v146 = vand.u32 %v36, 2139095040
    %v147 = vshrl.u32 %v146, 23
    %v148 = vsub.s32 %v147, 127
    %v149 = vand.u32 2147483647, %v36
    %v150 = vand.u32 %v149, 8388607
    %v151 = vor.u32 %v150, 8388608
    %v152 = vsub.s32 0, %v151
    %v153 = vadd.s32 %v148, 1
    %vm154 = vcmp.gt.s32.totalorder %v153, 0
    %v155 = vsel %vm154, %v153, 0
    %v156 = vshrl.u32 %v155, 5
    %v157 = vand.u32 %v155, 31
    %v158 = vsub.s32 32, %v157
    %v159 = vshrl.u32 683565275, %v158
    %v160 = vshll.u32 683565275, %v157
    %v161 = vshrl.u32 2475754826, %v158
    %v162 = vor.u32 %v160, %v161
    %v163 = vshll.u32 2475754826, %v157
    %v164 = vshrl.u32 2131351028, %v158
    %v165 = vor.u32 %v163, %v164
    %v166 = vshll.u32 2131351028, %v157
    %v167 = vshrl.u32 2102212464, %v158
    %v168 = vor.u32 %v166, %v167
    %v169 = vshll.u32 2102212464, %v157
    %v170 = vshrl.u32 920167782, %v158
    %v171 = vor.u32 %v169, %v170
    %v172 = vshll.u32 920167782, %v157
    %v173 = vshrl.u32 1326507024, %v158
    %v174 = vor.u32 %v172, %v173
    %vm175 = vcmp.lt.s32.totalorder %v156, 1
    %vm176 = vcmp.lt.s32.totalorder %v156, 2
    %vm177 = vcmp.lt.s32.totalorder %v156, 3
    %vm178 = vcmp.lt.s32.totalorder %v156, 4
    %v179 = vsel %vm175, %v159, %v162
    %v180 = vsel %vm178, %v168, 2102212464
    %v181 = vsel %vm177, %v165, %v180
    %v182 = vsel %vm176, %v179, %v181
    %v183 = vsel %vm175, %v162, %v165
    %v184 = vsel %vm178, %v171, 920167782
    %v185 = vsel %vm177, %v168, %v184
    %v186 = vsel %vm176, %v183, %v185
    %v187 = vsel %vm175, %v165, %v168
    %v188 = vsel %vm178, %v174, 1326507024
    %v189 = vsel %vm177, %v171, %v188
    %v190 = vsel %vm176, %v187, %v189
    %v191 = vshll.u32 %v151, 8
    %v192 = vmul.u32.u64.compose %v191, %v190
    %v193 = vextract.low.u32 %v192
    %v194 = vextract.high.u32 %v192
    %v195 = vmul.u32.u64.compose %v191, %v186
    %v196 = vextract.low.u32 %v195
    %v197 = vextract.high.u32 %v195
    %v198 = vmul.u32 %v191, %v182
    %v199 = vadd.s32 %v194, %v196
    %vm200 = vc.u32 %v194, %v196
    %v201 = vadd.s32 %v197, 1
    %v202 = vsel %vm200, %v201, %v197
    %v203 = vadd.s32 %v198, %v202
    %v204 = vadd.s32 %v203, 536870912
    %v205 = vshrl.u32 %v204, 30
    %v206 = vshll.u32 %v205, 30
    %v207 = vsub.s32 %v203, %v206
    %vm208 = vcmp.lt.s32.totalorder %v207, 0
    %v209 = vsub.s32 0, %v207
    %v210 = vsel %vm208, %v209, %v207
    %v211 = vclz %v210
    %v212 = vsub.s32 %v211, 2
    %vm213 = vcmp.gt.s32.totalorder 0, %v212
    %v214 = vsel %vm213, 0, %v212
    %v215 = vsub.s32 32, %v214
    %v216 = vshll.u32 %v207, %v214
    %v217 = vshrl.u32 %v199, %v215
    %v218 = vor.u32 %v216, %v217
    %v219 = vsub.s32 4294967266, %v214
    %v220 = vadd.s32 %v219, 127
    %v221 = vshll.u32 %v220, 23
    %v222 = vor.u32 4788187, %v221
    %v223 = vand.u32 2147483647, %v222
    %v225 = vcvt.s32.f32 %v218
    %v226 = vmul.f32 %v225, %v223
    %v227 = vxor.u32 %v226, 2147483648
    %v228 = vsel %vm145, %v227, %v226
    %v229 = vsub.s32 4, %v205
    %v230 = vsel %vm145, %v229, %v205
    %v231 = vsel %vm144, %v36, %v228
    %v232 = vsel %vm144, 0, %v230
    %v233 = vcosq.f32.pop %v231
    %v234 = vsinq.f32.pop %v231
    %vm235 = vweird.f32 %v36
    %v236 = vand.u32 %v232, 3
    %vm237 = vcmp.lt.s32.totalorder %v236, 2
    %vm238 = vcmp.eq.s32.totalorder %v236, 0
    %v239 = vxor.u32 %v234, 2147483648
    %v240 = vsel %vm238, %v233, %v239
    %vm241 = vcmp.eq.s32.totalorder %v236, 2
    %v242 = vxor.u32 %v233, 2147483648
    %v243 = vsel %vm241, %v242, %v234
    %v244 = vsel %vm237, %v240, %v243
    %v245 = vsel %vm235, nan, %v244
    %v246 = vsel %vm38, %v142, %v245
    %247 = vst [vmem:[#allocation5] sm:$0xff] %v246
    // Predicated region
    $region10: #{tpu_custom_call.1} parent=1 // pred_check
      _
    $region11: #{tpu_custom_call.1} parent=1 // pred_check_branch
      %249 = sbr.rel (0) target = $region13
    $region12: #{tpu_custom_call.1} parent=1 // pred_region
      %s251 = ssub.s32 128, 128
      %252 = vsyncadd [#allocation4], %s251
      %s254 = sshll.u32 [#allocation5], 4
      %s255 = int_to_ptr.vmem [resolvable:$true] %s254
      %257 = dma.vmem_to_hbm [thread:$0]  %s255, 128, %s1, [#allocation4]
    $region13: #{tpu_custom_call.1} parent=1 // pred_fallthru
      _
    // Predicated region
    $region14: #{tpu_custom_call.1} parent=1 // pred_check
      _
    $region15: #{tpu_custom_call.1} parent=1 // pred_check_branch
      %259 = sbr.rel (0) target = $region17
    $region16: #{tpu_custom_call.1} parent=1 // pred_region
      %260 = dma.done [#allocation4], 128
    $region17: #{tpu_custom_call.1} parent=1 // pred_fallthru
      _
    %261 = vsyncpa [#allocation3], 1
    %262 = vsyncpa [#allocation4], 1

// kernel: tpu_custom_call.1
$region0: #{tpu_custom_call.1}
  #allocation0 [shape = 'u32[]', space=smem, size = 0x4, offset = 0x4, fixed_abs, tag = 'smem constant byte address 0x4 - core index']
  #allocation1 [shape = 'u32[144,128]{1,0:T(1,128)}', space=vmem, size = 0x12000, scoped, tag = 'internal scratch']
  %s0 = inlined_call_operand.hbm [shape: f32[8,128], index: 0, kind: input, shape index: {}]
  %s1 = inlined_call_operand.hbm [shape: f32[8,128], index: 1, kind: output, shape index: {}]
  %s2 = sld [smem:[#allocation0]]
  $region18: #{tpu_custom_call.1} parent=0
    _
  %s4 = ssub.s32 1, %s2
  %s5 = scalar_select 0, %s4, %s2
  $region1: #{tpu_custom_call.1} parent=0
    #allocation2 [shape = 'u8[4096]{0}', space=vmem, size = 0x1000, scoped, tag = 'input window, operand 0, single buffered']
    #allocation3 [shape = 's32[1]{0}', space=sflag, size = 0x4, scoped, tag = 'scoped memory for tpu_custom_call.1']
    #allocation4 [shape = 's32[1]{0}', space=sflag, size = 0x4, scoped, tag = 'scoped memory for tpu_custom_call.1']
    #allocation5 [shape = 'u8[4096]{0}', space=vmem, size = 0x1000, scoped, tag = 'output window, operand 0, single buffered']
    %6 = vsyncpa [#allocation3], 0
    %7 = vsyncpa [#allocation4], 0
    // Predicated region
    $region2: #{tpu_custom_call.1} parent=1 // pred_check
      _
    $region3: #{tpu_custom_call.1} parent=1 // pred_check_branch
      %9 = sbr.rel (0) target = $region5
    $region4: #{tpu_custom_call.1} parent=1 // pred_region
      %s11 = ssub.s32 128, 128
      %12 = vsyncadd [#allocation3], %s11
      %s14 = sshll.u32 [#allocation2], 4
      %s15 = int_to_ptr.vmem [resolvable:$true] %s14
      %17 = dma.hbm_to_vmem [thread:$0]  %s0, 128, %s15, [#allocation3]
    $region5: #{tpu_custom_call.1} parent=1 // pred_fallthru
      _
    // Predicated region
    $region6: #{tpu_custom_call.1} parent=1 // pred_check
      _
    $region7: #{tpu_custom_call.1} parent=1 // pred_check_branch
      %19 = sbr.rel (0) target = $region9
    $region8: #{tpu_custom_call.1} parent=1 // pred_region
      %20 = dma.done [#allocation3], 128
    $region9: #{tpu_custom_call.1} parent=1 // pred_fallthru
      _
    %v21 = vld [vmem:[#allocation2] sm:$0xff]
    %22 = vst [vmem:[#allocation5] sm:$0xff] %v21
    // Predicated region
    $region10: #{tpu_custom_call.1} parent=1 // pred_check
      _
    $region11: #{tpu_custom_call.1} parent=1 // pred_check_branch
      %24 = sbr.rel (0) target = $region13
    $region12: #{tpu_custom_call.1} parent=1 // pred_region
      %s26 = ssub.s32 128, 128
      %27 = vsyncadd [#allocation4], %s26
      %s29 = sshll.u32 [#allocation5], 4
      %s30 = int_to_ptr.vmem [resolvable:$true] %s29
      %32 = dma.vmem_to_hbm [thread:$0]  %s30, 128, %s1, [#allocation4]
    $region13: #{tpu_custom_call.1} parent=1 // pred_fallthru
      _
    // Predicated region
    $region14: #{tpu_custom_call.1} parent=1 // pred_check
      _
    $region15: #{tpu_custom_call.1} parent=1 // pred_check_branch
      %34 = sbr.rel (0) target = $region17
    $region16: #{tpu_custom_call.1} parent=1 // pred_region
      %35 = dma.done [#allocation4], 128
    $region17: #{tpu_custom_call.1} parent=1 // pred_fallthru
      _
    %36 = vsyncpa [#allocation3], 1
    %37 = vsyncpa [#allocation4], 1

</llo_original>
